<compile_context>
chip_gen: v7x
topology: tpu7x:2x2x1
jax: 0.10.0
libtpu: 0.0.40
codegen_flags: <defaults>
</compile_context>

<pallas_src>
import jax
import jax.numpy as jnp
from jax import lax
from jax.experimental import pallas as pl
from jax.experimental.pallas import tpu as pltpu  # noqa: F401  (kept for TPU-specific tuning hooks)

# ----------------------------- sizes (small, module-consistent) ------------------------
B = 4                       # batch
C, H, W = 3, 16, 16         # input image NCHW
FEAT_C = 2048               # resnet.fc.in_features for ResNet-152
FEAT_H, FEAT_W = 2, 2       # pre-avgpool spatial extent of the stand-in trunk
EMBED = 128                 # embed_size
BN_EPS = 1e-5


# --------------------- fused kernel: (pool+proj+Linear folded) matmul -> BatchNorm1d ---
def _encoder_fused_kernel(x_ref, w_ref, gb_ref, o_ref):
    # (1) single MXU matmul: (B, C*H*W) bf16 @ (C*H*W, EMBED) bf16, f32 accumulation.
    #     (trunk projection, global average pool, and Linear are all folded into w_ref;
    #      the Linear bias is omitted because training-mode BN cancels it exactly.)
    y = jnp.dot(x_ref[...], w_ref[...], preferred_element_type=jnp.float32)

    # (2) BatchNorm1d training-mode forward: batch mean / biased batch variance (f32)
    mean = jnp.mean(y, axis=0, keepdims=True)
    var = jnp.mean(jnp.square(y - mean), axis=0, keepdims=True)
    inv = lax.rsqrt(var + BN_EPS)                     # EUP rsqrt -> free slot
    gamma = gb_ref[0:1, :]                            # (1, EMBED)
    beta = gb_ref[1:2, :]                             # (1, EMBED)
    o_ref[...] = (y - mean) * inv * gamma + beta


def fold_params(params):
    """Fold avg-pool into the trunk weight, then trunk@linear into ONE weight (f32 product,
    single bf16 cast); drop the BN-cancelled Linear bias; pack gamma/beta into one array."""
    w_stem, w_lin, b_lin, gamma, beta = params
    del b_lin  # exactly cancelled by training-mode BatchNorm's batch-mean subtraction
    # column n of w_stem maps to (channel c = n // (fh*fw), spatial s = n % (fh*fw));
    # avg-pool over s commutes with the matmul -> average the weight columns per channel.
    w_pooled = w_stem.reshape(C * H * W, FEAT_C, FEAT_H * FEAT_W).mean(axis=-1)   # (768, 2048)
    w_combined = jnp.dot(w_pooled, w_lin, precision=lax.Precision.HIGHEST)        # (768, 128) f32
    gb = jnp.concatenate([gamma, beta], axis=0)                                    # (2, 128) f32
    return (w_combined.astype(jnp.bfloat16), gb)


def encoder_cnn_forward(images, folded_params):
    w_combined, gb = folded_params
    b = images.shape[0]
    x_flat = images.reshape(b, -1).astype(jnp.bfloat16)        # (B, C*H*W) bf16
    # No grid: single invocation, whole (tiny) arrays resident in VMEM, no double-buffering.
    return pl.pallas_call(
        _encoder_fused_kernel,
        out_shape=jax.ShapeDtypeStruct((b, EMBED), jnp.float32),
    )(x_flat, w_combined, gb)


# ----------------------------- JAX reference (same precision choices as the kernel) ----
def reference_forward_matched(images, folded_params):
    """Folded single matmul -> train-mode BatchNorm1d, bf16 matmul / f32 accumulation."""
    w_combined, gb = folded_params
    b = images.shape[0]
    x = images.reshape(b, -1).astype(jnp.bfloat16)
    y = jnp.dot(x, w_combined, preferred_element_type=jnp.float32)
    mean = y.mean(axis=0, keepdims=True)
    var = ((y - mean) ** 2).mean(axis=0, keepdims=True)
    return (y - mean) / jnp.sqrt(var + BN_EPS) * gb[0:1, :] + gb[1:2, :]


if __name__ == "__main__":
    key = jax.random.PRNGKey(0)
    k_img, k_stem, k_w, k_b = jax.random.split(key, 4)

    images = jax.random.normal(k_img, (B, C, H, W), jnp.float32)

    # deterministic synthetic parameters (shapes implied by the module's __init__)
    w_stem = 0.02 * jax.random.normal(k_stem, (C * H * W, FEAT_C * FEAT_H * FEAT_W),
                                      jnp.float32)
    w_lin = 0.02 * jax.random.normal(k_w, (FEAT_C, EMBED), jnp.float32)   # Linear(2048, embed)
    b_lin = 0.02 * jax.random.normal(k_b, (1, EMBED), jnp.float32)        # Linear bias
    gamma = jnp.ones((1, EMBED), jnp.float32)                             # BN weight init
    beta = jnp.zeros((1, EMBED), jnp.float32)                             # BN bias init
    params = (w_stem, w_lin, b_lin, gamma, beta)

    folded = fold_params(params)
    out = encoder_cnn_forward(images, folded)
    out = jax.block_until_ready(out)
    assert out.shape == (B, EMBED)

    # (a) The algebraic folds (avg-pool into weight, weight@weight, bias dropped under
    #     training-mode BN) preserve module semantics — checked entirely in f32:
    x_flat = images.reshape(B, -1)
    feats = jnp.dot(x_flat, w_stem, precision=lax.Precision.HIGHEST)
    feats = feats.reshape(B, FEAT_C, FEAT_H, FEAT_W).mean(axis=(2, 3))        # GAP
    y_mod = jnp.dot(feats, w_lin, precision=lax.Precision.HIGHEST) + b_lin    # Linear (+bias)
    m_mod = y_mod.mean(axis=0, keepdims=True)
    v_mod = ((y_mod - m_mod) ** 2).mean(axis=0, keepdims=True)
    out_mod = (y_mod - m_mod) / jnp.sqrt(v_mod + BN_EPS) * gamma + beta       # train-mode BN

    w_pooled_f32 = w_stem.reshape(C * H * W, FEAT_C, FEAT_H * FEAT_W).mean(axis=-1)
    w_comb_f32 = jnp.dot(w_pooled_f32, w_lin, precision=lax.Precision.HIGHEST)
    y_fold = jnp.dot(x_flat, w_comb_f32, precision=lax.Precision.HIGHEST)     # no bias
    m_f = y_fold.mean(axis=0, keepdims=True)
    v_f = ((y_fold - m_f) ** 2).mean(axis=0, keepdims=True)
    out_fold = (y_fold - m_f) / jnp.sqrt(v_f + BN_EPS) * gamma + beta
    assert jnp.allclose(out_mod, out_fold, rtol=1e-3, atol=1e-3), "fold/bias-drop mismatch"

    # (b) The fused kernel matches a JAX reference with identical precision choices.
    #     (A tight comparison against a pure-f32 reference is not meaningful: the bf16
    #      weight combined with batch-of-4 BatchNorm can amplify ~1e-3 matmul quantization
    #      error by 1/std for low-variance columns.)
    ref = reference_forward_matched(images, folded)
    assert jnp.allclose(out, ref, rtol=1e-2, atol=1e-2), "mismatch vs JAX reference"

    print("KERNEL_OK")
</pallas_src>

<mosaic_0001>
module attributes {stable_mosaic.version = 11 : i64} {
  func.func @_encoder_fused_kernel(%arg0: memref<4x768xbf16, #tpu.memory_space<vmem>>, %arg1: memref<768x128xbf16, #tpu.memory_space<vmem>>, %arg2: memref<2x128xf32, #tpu.memory_space<vmem>>, %arg3: memref<4x128xf32, #tpu.memory_space<vmem>>) attributes {dimension_semantics = [], scalar_prefetch = 0 : i64, scratch_operands = 0 : i64, tpu.core_type = #tpu.core_type<tc>} {
    %c0 = arith.constant 0 : index
    %c0_0 = arith.constant 0 : index
    %0 = vector.load %arg0[%c0, %c0_0] : memref<4x768xbf16, #tpu.memory_space<vmem>>, vector<4x768xbf16>
    %c0_1 = arith.constant 0 : index
    %c0_2 = arith.constant 0 : index
    %1 = vector.load %arg1[%c0_1, %c0_2] : memref<768x128xbf16, #tpu.memory_space<vmem>>, vector<768x128xbf16>
    %cst = arith.constant dense<0.000000e+00> : vector<4x128xf32>
    %2 = tpu.matmul %0, %1, %cst {dimension_numbers = #tpu.dot_dimension_numbers<[1], [0], [0], [1], [0, 0, 1, 1], [], []>} : vector<4x768xbf16>, vector<768x128xbf16>, vector<4x128xf32> -> vector<4x128xf32>
    %cst_3 = arith.constant dense<0.000000e+00> : vector<128xf32>
    %3 = vector.multi_reduction <add>, %2, %cst_3 [0] : vector<4x128xf32> to vector<128xf32>
    %4 = vector.shape_cast %3 : vector<128xf32> to vector<1x128xf32>
    %cst_4 = arith.constant 4.000000e+00 : f32
    %5 = vector.broadcast %cst_4 : f32 to vector<1x128xf32>
    %6 = arith.divf %4, %5 : vector<1x128xf32>
    %7 = vector.broadcast %6 : vector<1x128xf32> to vector<4x128xf32>
    %8 = arith.subf %2, %7 : vector<4x128xf32>
    %9 = arith.mulf %8, %8 : vector<4x128xf32>
    %cst_5 = arith.constant dense<0.000000e+00> : vector<128xf32>
    %10 = vector.multi_reduction <add>, %9, %cst_5 [0] : vector<4x128xf32> to vector<128xf32>
    %11 = vector.shape_cast %10 : vector<128xf32> to vector<1x128xf32>
    %cst_6 = arith.constant 4.000000e+00 : f32
    %12 = vector.broadcast %cst_6 : f32 to vector<1x128xf32>
    %13 = arith.divf %11, %12 : vector<1x128xf32>
    %cst_7 = arith.constant 9.99999974E-6 : f32
    %14 = vector.broadcast %cst_7 : f32 to vector<1x128xf32>
    %15 = arith.addf %13, %14 : vector<1x128xf32>
    %16 = math.rsqrt %15 : vector<1x128xf32>
    %c0_8 = arith.constant 0 : index
    %c0_9 = arith.constant 0 : index
    %17 = vector.load %arg2[%c0_8, %c0_9] : memref<2x128xf32, #tpu.memory_space<vmem>>, vector<1x128xf32>
    %c1 = arith.constant 1 : index
    %c0_10 = arith.constant 0 : index
    %18 = vector.load %arg2[%c1, %c0_10] : memref<2x128xf32, #tpu.memory_space<vmem>>, vector<1x128xf32>
    %19 = vector.broadcast %6 : vector<1x128xf32> to vector<4x128xf32>
    %20 = arith.subf %2, %19 : vector<4x128xf32>
    %21 = vector.broadcast %16 : vector<1x128xf32> to vector<4x128xf32>
    %22 = arith.mulf %20, %21 : vector<4x128xf32>
    %23 = vector.broadcast %17 : vector<1x128xf32> to vector<4x128xf32>
    %24 = arith.mulf %22, %23 : vector<4x128xf32>
    %25 = vector.broadcast %18 : vector<1x128xf32> to vector<4x128xf32>
    %26 = arith.addf %24, %25 : vector<4x128xf32>
    %c0_11 = arith.constant 0 : index
    %c0_12 = arith.constant 0 : index
    %27 = vector.load %arg3[%c0_11, %c0_12] : memref<4x128xf32, #tpu.memory_space<vmem>>, vector<4x128xf32>
    tpu.vector_store %arg3[%c0_11, %c0_12], %26 {strides = array<i32>} : memref<4x128xf32, #tpu.memory_space<vmem>>, vector<4x128xf32>,
    return
  }
}

</mosaic_0001>

<llo_original>
// kernel: tpu_custom_call.1
$region0: #{tpu_custom_call.1}
  #allocation0 [shape = 'u32[]', space=smem, size = 0x4, offset = 0x4, fixed_abs, tag = 'smem constant byte address 0x4 - core index']
  #allocation1 [shape = 'u32[144,128]{1,0:T(1,128)}', space=vmem, size = 0x12000, scoped, tag = 'internal scratch']
  %s0 = inlined_call_operand.hbm [shape: bf16[4,768], index: 0, kind: input, shape index: {}]
  %s1 = inlined_call_operand.hbm [shape: bf16[768,128], index: 1, kind: input, shape index: {}]
  %s2 = inlined_call_operand.vmem [shape: f32[2,128], index: 2, kind: input, shape index: {}]
  %s3 = inlined_call_operand.hbm [shape: f32[4,128], index: 3, kind: output, shape index: {}]
  %s4 = sld [smem:[#allocation0]]
  $region30: #{tpu_custom_call.1} parent=0
    _
  %s6 = ssub.s32 1, %s4
  %s7 = scalar_select 0, %s6, %s4
  $region1: #{tpu_custom_call.1} parent=0
    #allocation2 [shape = 'u8[6144]{0}', space=vmem, size = 0x1800, scoped, tag = 'input window, operand 0, single buffered']
    #allocation3 [shape = 's32[1]{0}', space=sflag, size = 0x4, scoped, tag = 'scoped memory for tpu_custom_call.1']
    #allocation4 [shape = 's32[1]{0}', space=sflag, size = 0x4, scoped, tag = 'scoped memory for tpu_custom_call.1']
    #allocation5 [shape = 'u8[196608]{0}', space=vmem, size = 0x30000, scoped, tag = 'input window, operand 1, single buffered']
    #allocation6 [shape = 's32[1]{0}', space=sflag, size = 0x4, scoped, tag = 'scoped memory for tpu_custom_call.1']
    #allocation7 [shape = 'u8[2048]{0}', space=vmem, size = 0x800, scoped, tag = 'output window, operand 0, single buffered']
    %8 = vsyncpa [#allocation3], 0
    %9 = vsyncpa [#allocation6], 0
    %10 = vsyncpa [#allocation4], 0
    // Predicated region
    $region2: #{tpu_custom_call.1} parent=1 // pred_check
      _
    $region3: #{tpu_custom_call.1} parent=1 // pred_check_branch
      %12 = sbr.rel (0) target = $region5
    $region4: #{tpu_custom_call.1} parent=1 // pred_region
      %s14 = ssub.s32 192, 192
      %15 = vsyncadd [#allocation3], %s14
      %s17 = sshll.u32 [#allocation2], 4
      %s18 = int_to_ptr.vmem [resolvable:$true] %s17
      %20 = dma.hbm_to_vmem [thread:$0]  %s0, 192, %s18, [#allocation3]
    $region5: #{tpu_custom_call.1} parent=1 // pred_fallthru
      _
    // Predicated region
    $region6: #{tpu_custom_call.1} parent=1 // pred_check
      _
    $region7: #{tpu_custom_call.1} parent=1 // pred_check_branch
      %22 = sbr.rel (0) target = $region9
    $region8: #{tpu_custom_call.1} parent=1 // pred_region
      %s24 = ssub.s32 6144, 6144
      %25 = vsyncadd [#allocation6], %s24
      %s26 = sshll.u32 [#allocation5], 4
      %s27 = int_to_ptr.vmem [resolvable:$true] %s26
      %32 = dma.hbm_to_vmem [thread:$0]  %s1, 6144, %s27, [#allocation6], 64, 64, 4
    $region9: #{tpu_custom_call.1} parent=1 // pred_fallthru
      _
    // Predicated region
    $region10: #{tpu_custom_call.1} parent=1 // pred_check
      _
    $region11: #{tpu_custom_call.1} parent=1 // pred_check_branch
      %34 = sbr.rel (0) target = $region13
    $region12: #{tpu_custom_call.1} parent=1 // pred_region
      _
    $region13: #{tpu_custom_call.1} parent=1 // pred_fallthru
      _
    // Predicated region
    $region14: #{tpu_custom_call.1} parent=1 // pred_check
      _
    $region15: #{tpu_custom_call.1} parent=1 // pred_check_branch
      %36 = sbr.rel (0) target = $region17
    $region16: #{tpu_custom_call.1} parent=1 // pred_region
      %37 = dma.done [#allocation3], 192
    $region17: #{tpu_custom_call.1} parent=1 // pred_fallthru
      _
    // Predicated region
    $region18: #{tpu_custom_call.1} parent=1 // pred_check
      _
    $region19: #{tpu_custom_call.1} parent=1 // pred_check_branch
      %39 = sbr.rel (0) target = $region21
    $region20: #{tpu_custom_call.1} parent=1 // pred_region
      %40 = dma.done [#allocation6], 6144
    $region21: #{tpu_custom_call.1} parent=1 // pred_fallthru
      _
    %v42 = vld [vmem:[#allocation2] sm:$0xff]
    %v43 = vld [vmem:[#allocation2 + $0x8] sm:$0xf]
    %v44 = vld [vmem:[#allocation5] sm:$0xf]
    %v45 = vld [vmem:[#allocation5 + $0x4] sm:$0xf]
    %v46 = vld [vmem:[#allocation5 + $0x8] sm:$0xf]
    %v47 = vld [vmem:[#allocation5 + $0xc] sm:$0xf]
    %v48 = vld [vmem:[#allocation5 + $0x10] sm:$0xf]
    %v49 = vld [vmem:[#allocation5 + $0x14] sm:$0xf]
    %v50 = vld [vmem:[#allocation5 + $0x18] sm:$0xf]
    %v51 = vld [vmem:[#allocation5 + $0x1c] sm:$0xf]
    %v52 = vld [vmem:[#allocation5 + $0x20] sm:$0xf]
    %v53 = vld [vmem:[#allocation5 + $0x24] sm:$0xf]
    %v54 = vld [vmem:[#allocation5 + $0x28] sm:$0xf]
    %v55 = vld [vmem:[#allocation5 + $0x2c] sm:$0xf]
    %v56 = vld [vmem:[#allocation5 + $0x30] sm:$0xf]
    %v57 = vld [vmem:[#allocation5 + $0x34] sm:$0xf]
    %v58 = vld [vmem:[#allocation5 + $0x38] sm:$0xf]
    %v59 = vld [vmem:[#allocation5 + $0x3c] sm:$0xf]
    %v60 = vld [vmem:[#allocation5 + $0x40] sm:$0xf]
    %v61 = vld [vmem:[#allocation5 + $0x44] sm:$0xf]
    %v62 = vld [vmem:[#allocation5 + $0x48] sm:$0xf]
    %v63 = vld [vmem:[#allocation5 + $0x4c] sm:$0xf]
    %v64 = vld [vmem:[#allocation5 + $0x50] sm:$0xf]
    %v65 = vld [vmem:[#allocation5 + $0x54] sm:$0xf]
    %v66 = vld [vmem:[#allocation5 + $0x58] sm:$0xf]
    %v67 = vld [vmem:[#allocation5 + $0x5c] sm:$0xf]
    %v68 = vld [vmem:[#allocation5 + $0x60] sm:$0xf]
    %v69 = vld [vmem:[#allocation5 + $0x64] sm:$0xf]
    %v70 = vld [vmem:[#allocation5 + $0x68] sm:$0xf]
    %v71 = vld [vmem:[#allocation5 + $0x6c] sm:$0xf]
    %v72 = vld [vmem:[#allocation5 + $0x70] sm:$0xf]
    %v73 = vld [vmem:[#allocation5 + $0x74] sm:$0xf]
    %v74 = vld [vmem:[#allocation5 + $0x78] sm:$0xf]
    %v75 = vld [vmem:[#allocation5 + $0x7c] sm:$0xf]
    %v76 = vld [vmem:[#allocation5 + $0x80] sm:$0xf]
    %v77 = vld [vmem:[#allocation5 + $0x84] sm:$0xf]
    %v78 = vld [vmem:[#allocation5 + $0x88] sm:$0xf]
    %v79 = vld [vmem:[#allocation5 + $0x8c] sm:$0xf]
    %v80 = vld [vmem:[#allocation5 + $0x90] sm:$0xf]
    %v81 = vld [vmem:[#allocation5 + $0x94] sm:$0xf]
    %v82 = vld [vmem:[#allocation5 + $0x98] sm:$0xf]
    %v83 = vld [vmem:[#allocation5 + $0x9c] sm:$0xf]
    %v84 = vld [vmem:[#allocation5 + $0xa0] sm:$0xf]
    %v85 = vld [vmem:[#allocation5 + $0xa4] sm:$0xf]
    %v86 = vld [vmem:[#allocation5 + $0xa8] sm:$0xf]
    %v87 = vld [vmem:[#allocation5 + $0xac] sm:$0xf]
    %v88 = vld [vmem:[#allocation5 + $0xb0] sm:$0xf]
    %v89 = vld [vmem:[#allocation5 + $0xb4] sm:$0xf]
    %v90 = vld [vmem:[#allocation5 + $0xb8] sm:$0xf]
    %v91 = vld [vmem:[#allocation5 + $0xbc] sm:$0xf]
    %v92 = vld [vmem:[#allocation5 + $0xc0] sm:$0xf]
    %v93 = vld [vmem:[#allocation5 + $0xc4] sm:$0xf]
    %v94 = vld [vmem:[#allocation5 + $0xc8] sm:$0xf]
    %v95 = vld [vmem:[#allocation5 + $0xcc] sm:$0xf]
    %v96 = vld [vmem:[#allocation5 + $0xd0] sm:$0xf]
    %v97 = vld [vmem:[#allocation5 + $0xd4] sm:$0xf]
    %v98 = vld [vmem:[#allocation5 + $0xd8] sm:$0xf]
    %v99 = vld [vmem:[#allocation5 + $0xdc] sm:$0xf]
    %v100 = vld [vmem:[#allocation5 + $0xe0] sm:$0xf]
    %v101 = vld [vmem:[#allocation5 + $0xe4] sm:$0xf]
    %v102 = vld [vmem:[#allocation5 + $0xe8] sm:$0xf]
    %v103 = vld [vmem:[#allocation5 + $0xec] sm:$0xf]
    %v104 = vld [vmem:[#allocation5 + $0xf0] sm:$0xf]
    %v105 = vld [vmem:[#allocation5 + $0xf4] sm:$0xf]
    %v106 = vld [vmem:[#allocation5 + $0xf8] sm:$0xf]
    %v107 = vld [vmem:[#allocation5 + $0xfc] sm:$0xf]
    %v108 = vld [vmem:[#allocation5 + $0x100] sm:$0xf]
    %v109 = vld [vmem:[#allocation5 + $0x104] sm:$0xf]
    %v110 = vld [vmem:[#allocation5 + $0x108] sm:$0xf]
    %v111 = vld [vmem:[#allocation5 + $0x10c] sm:$0xf]
    %v112 = vld [vmem:[#allocation5 + $0x110] sm:$0xf]
    %v113 = vld [vmem:[#allocation5 + $0x114] sm:$0xf]
    %v114 = vld [vmem:[#allocation5 + $0x118] sm:$0xf]
    %v115 = vld [vmem:[#allocation5 + $0x11c] sm:$0xf]
    %v116 = vld [vmem:[#allocation5 + $0x120] sm:$0xf]
    %v117 = vld [vmem:[#allocation5 + $0x124] sm:$0xf]
    %v118 = vld [vmem:[#allocation5 + $0x128] sm:$0xf]
    %v119 = vld [vmem:[#allocation5 + $0x12c] sm:$0xf]
    %v120 = vld [vmem:[#allocation5 + $0x130] sm:$0xf]
    %v121 = vld [vmem:[#allocation5 + $0x134] sm:$0xf]
    %v122 = vld [vmem:[#allocation5 + $0x138] sm:$0xf]
    %v123 = vld [vmem:[#allocation5 + $0x13c] sm:$0xf]
    %v124 = vld [vmem:[#allocation5 + $0x140] sm:$0xf]
    %v125 = vld [vmem:[#allocation5 + $0x144] sm:$0xf]
    %v126 = vld [vmem:[#allocation5 + $0x148] sm:$0xf]
    %v127 = vld [vmem:[#allocation5 + $0x14c] sm:$0xf]
    %v128 = vld [vmem:[#allocation5 + $0x150] sm:$0xf]
    %v129 = vld [vmem:[#allocation5 + $0x154] sm:$0xf]
    %v130 = vld [vmem:[#allocation5 + $0x158] sm:$0xf]
    %v131 = vld [vmem:[#allocation5 + $0x15c] sm:$0xf]
    %v132 = vld [vmem:[#allocation5 + $0x160] sm:$0xf]
    %v133 = vld [vmem:[#allocation5 + $0x164] sm:$0xf]
    %v134 = vld [vmem:[#allocation5 + $0x168] sm:$0xf]
    %v135 = vld [vmem:[#allocation5 + $0x16c] sm:$0xf]
    %v136 = vld [vmem:[#allocation5 + $0x170] sm:$0xf]
    %v137 = vld [vmem:[#allocation5 + $0x174] sm:$0xf]
    %v138 = vld [vmem:[#allocation5 + $0x178] sm:$0xf]
    %v139 = vld [vmem:[#allocation5 + $0x17c] sm:$0xf]
    %v142 = vcombine.high %v42, %v42
    %v144 = vunpack.c.l.s4 1983009808
    %v145 = vunpack.c.0.s8 %v144
    %v146 = vlaneseq
    %v147 = vshrl.u32 %v146, 7
    %v148 = vsub.s32 %v145, %v147
    %v149 = vrot.slane %v42, %v148
    %v151 = vunpack.c.l.s4 1983009808
    %v152 = vunpack.c.0.s8 %v151
    %v153 = vlaneseq
    %v154 = vshrl.u32 %v153, 7
    %v155 = vsub.s32 %v152, %v154
    %v156 = vrot.slane %v142, %v155
    %v157 = vcombine.high %v149, %v149
    %v158 = vcombine.high %v156, %v156
    %v160 = vunpack.c.l.s4 1983009808
    %v161 = vunpack.c.0.s8 %v160
    %v162 = vlaneseq
    %v163 = vshrl.u32 %v162, 7
    %v164 = vsub.s32 %v161, %v163
    %v165 = vrot.slane %v43, %v164
    %v166 = vcombine.high %v165, %v165
    %v269 = vunpack.c.l.b16 %v44
    %v270 = vunpack.c.l.b16 %v45
    %v271 = vunpack.c.l.b16 %v46
    %v272 = vunpack.c.l.b16 %v47
    %v273 = vunpack.c.l.b16 %v48
    %v274 = vunpack.c.l.b16 %v49
    %v275 = vunpack.c.l.b16 %v50
    %v276 = vunpack.c.l.b16 %v51
    %v277 = vunpack.c.l.b16 %v52
    %v278 = vunpack.c.l.b16 %v53
    %v279 = vunpack.c.l.b16 %v54
    %v280 = vunpack.c.l.b16 %v55
    %v281 = vunpack.c.l.b16 %v56
    %v282 = vunpack.c.l.b16 %v57
    %v283 = vunpack.c.l.b16 %v58
    %v284 = vunpack.c.l.b16 %v59
    %v285 = vunpack.c.l.b16 %v60
    %v286 = vunpack.c.l.b16 %v61
    %v287 = vunpack.c.l.b16 %v62
    %v288 = vunpack.c.l.b16 %v63
    %v289 = vunpack.c.l.b16 %v64
    %v290 = vunpack.c.l.b16 %v65
    %v291 = vunpack.c.l.b16 %v66
    %v292 = vunpack.c.l.b16 %v67
    %v293 = vunpack.c.l.b16 %v68
    %v294 = vunpack.c.l.b16 %v69
    %v295 = vunpack.c.l.b16 %v70
    %v296 = vunpack.c.l.b16 %v71
    %v297 = vunpack.c.l.b16 %v72
    %v298 = vunpack.c.l.b16 %v73
    %v299 = vunpack.c.l.b16 %v74
    %v300 = vunpack.c.l.b16 %v75
    %v301 = vunpack.c.l.b16 %v76
    %v302 = vunpack.c.l.b16 %v77
    %v303 = vunpack.c.l.b16 %v78
    %v304 = vunpack.c.l.b16 %v79
    %v305 = vunpack.c.l.b16 %v80
    %v306 = vunpack.c.l.b16 %v81
    %v307 = vunpack.c.l.b16 %v82
    %v308 = vunpack.c.l.b16 %v83
    %v309 = vunpack.c.l.b16 %v84
    %v310 = vunpack.c.l.b16 %v85
    %v311 = vunpack.c.l.b16 %v86
    %v312 = vunpack.c.l.b16 %v87
    %v313 = vunpack.c.l.b16 %v88
    %v314 = vunpack.c.l.b16 %v89
    %v315 = vunpack.c.l.b16 %v90
    %v316 = vunpack.c.l.b16 %v91
    %v317 = vunpack.c.l.b16 %v92
    %v318 = vunpack.c.l.b16 %v93
    %v319 = vunpack.c.l.b16 %v94
    %v320 = vunpack.c.l.b16 %v95
    %v321 = vunpack.c.l.b16 %v96
    %v322 = vunpack.c.l.b16 %v97
    %v323 = vunpack.c.l.b16 %v98
    %v324 = vunpack.c.l.b16 %v99
    %v325 = vunpack.c.l.b16 %v100
    %v326 = vunpack.c.l.b16 %v101
    %v327 = vunpack.c.l.b16 %v102
    %v328 = vunpack.c.l.b16 %v103
    %v329 = vunpack.c.l.b16 %v104
    %v330 = vunpack.c.l.b16 %v105
    %v331 = vunpack.c.l.b16 %v106
    %v332 = vunpack.c.l.b16 %v107
    %v333 = vunpack.c.l.b16 %v108
    %v334 = vunpack.c.l.b16 %v109
    %v335 = vunpack.c.l.b16 %v110
    %v336 = vunpack.c.l.b16 %v111
    %v337 = vunpack.c.l.b16 %v112
    %v338 = vunpack.c.l.b16 %v113
    %v339 = vunpack.c.l.b16 %v114
    %v340 = vunpack.c.l.b16 %v115
    %v341 = vunpack.c.l.b16 %v116
    %v342 = vunpack.c.l.b16 %v117
    %v343 = vunpack.c.l.b16 %v118
    %v344 = vunpack.c.l.b16 %v119
    %v345 = vunpack.c.l.b16 %v120
    %v346 = vunpack.c.l.b16 %v121
    %v347 = vunpack.c.l.b16 %v122
    %v348 = vunpack.c.l.b16 %v123
    %v349 = vunpack.c.l.b16 %v124
    %v350 = vunpack.c.l.b16 %v125
    %v351 = vunpack.c.l.b16 %v126
    %v352 = vunpack.c.l.b16 %v127
    %v353 = vunpack.c.l.b16 %v128
    %v354 = vunpack.c.l.b16 %v129
    %v355 = vunpack.c.l.b16 %v130
    %v356 = vunpack.c.l.b16 %v131
    %v357 = vunpack.c.l.b16 %v132
    %v358 = vunpack.c.l.b16 %v133
    %v359 = vunpack.c.l.b16 %v134
    %v360 = vunpack.c.l.b16 %v135
    %v361 = vunpack.c.l.b16 %v136
    %v362 = vunpack.c.l.b16 %v137
    %v363 = vunpack.c.l.b16 %v138
    %v364 = vunpack.c.l.b16 %v139
    %v365 = vpack.c.b16 %v270, %v269
    %v366 = vpack.c.b16 %v272, %v271
    %v367 = vpack.c.b16 %v274, %v273
    %v368 = vpack.c.b16 %v276, %v275
    %v369 = vpack.c.b16 %v278, %v277
    %v370 = vpack.c.b16 %v280, %v279
    %v371 = vpack.c.b16 %v282, %v281
    %v372 = vpack.c.b16 %v284, %v283
    %v373 = vpack.c.b16 %v286, %v285
    %v374 = vpack.c.b16 %v288, %v287
    %v375 = vpack.c.b16 %v290, %v289
    %v376 = vpack.c.b16 %v292, %v291
    %v377 = vpack.c.b16 %v294, %v293
    %v378 = vpack.c.b16 %v296, %v295
    %v379 = vpack.c.b16 %v298, %v297
    %v380 = vpack.c.b16 %v300, %v299
    %v381 = vpack.c.b16 %v302, %v301
    %v382 = vpack.c.b16 %v304, %v303
    %v383 = vpack.c.b16 %v306, %v305
    %v384 = vpack.c.b16 %v308, %v307
    %v385 = vpack.c.b16 %v310, %v309
    %v386 = vpack.c.b16 %v312, %v311
    %v387 = vpack.c.b16 %v314, %v313
    %v388 = vpack.c.b16 %v316, %v315
    %v389 = vpack.c.b16 %v318, %v317
    %v390 = vpack.c.b16 %v320, %v319
    %v391 = vpack.c.b16 %v322, %v321
    %v392 = vpack.c.b16 %v324, %v323
    %v393 = vpack.c.b16 %v326, %v325
    %v394 = vpack.c.b16 %v328, %v327
    %v395 = vpack.c.b16 %v330, %v329
    %v396 = vpack.c.b16 %v332, %v331
    %v397 = vpack.c.b16 %v334, %v333
    %v398 = vpack.c.b16 %v336, %v335
    %v399 = vpack.c.b16 %v338, %v337
    %v400 = vpack.c.b16 %v340, %v339
    %v401 = vpack.c.b16 %v342, %v341
    %v402 = vpack.c.b16 %v344, %v343
    %v403 = vpack.c.b16 %v346, %v345
    %v404 = vpack.c.b16 %v348, %v347
    %v405 = vpack.c.b16 %v350, %v349
    %v406 = vpack.c.b16 %v352, %v351
    %v407 = vpack.c.b16 %v354, %v353
    %v408 = vpack.c.b16 %v356, %v355
    %v409 = vpack.c.b16 %v358, %v357
    %v410 = vpack.c.b16 %v360, %v359
    %v411 = vpack.c.b16 %v362, %v361
    %v412 = vpack.c.b16 %v364, %v363
    %461 = vmatprep.subr.bf16.mxu0 0
    %462 = vmatpush1.bf16.msra.mxu0 %v365
    %463 = vmatprep.subr.bf16.mxu0 0
    %464 = vmatpush1.bf16.msra.mxu0 %v366
    %465 = vmatprep.subr.bf16.mxu0 0
    %466 = vmatpush1.bf16.msra.mxu0 %v367
    %467 = vmatprep.subr.bf16.mxu0 0
    %468 = vmatpush1.bf16.msra.mxu0 %v368
    %469 = vmatprep.subr.bf16.mxu0 0
    %470 = vmatpush1.bf16.msra.mxu0 %v369
    %471 = vmatprep.subr.bf16.mxu0 0
    %472 = vmatpush1.bf16.msra.mxu0 %v370
    %473 = vmatprep.subr.bf16.mxu0 0
    %474 = vmatpush1.bf16.msra.mxu0 %v371
    %475 = vmatprep.subr.bf16.mxu0 0
    %476 = vmatpush1.bf16.msra.mxu0 %v372
    %477 = vmatprep.subr.bf16.mxu0 0
    %478 = vmatpush1.bf16.msra.mxu0 %v373
    %479 = vmatprep.subr.bf16.mxu0 0
    %480 = vmatpush1.bf16.msra.mxu0 %v374
    %481 = vmatprep.subr.bf16.mxu0 0
    %482 = vmatpush1.bf16.msra.mxu0 %v375
    %483 = vmatprep.subr.bf16.mxu0 0
    %484 = vmatpush1.bf16.msra.mxu0 %v376
    %485 = vmatprep.subr.bf16.mxu0 0
    %486 = vmatpush1.bf16.msra.mxu0 %v377
    %487 = vmatprep.subr.bf16.mxu0 0
    %488 = vmatpush1.bf16.msra.mxu0 %v378
    %489 = vmatprep.subr.bf16.mxu0 0
    %490 = vmatpush1.bf16.msra.mxu0 %v379
    %491 = vmatprep.subr.bf16.mxu0 0
    %492 = vmatpush1.bf16.msra.mxu0 %v380
    %493 = vmatprep.mubr.bf16.mxu0 %v157
    %494 = vmatmul.mubr.bf16.gmra.mrb[0].mxu0 %v149
    %v495 = vpop.f32.mrb[0].mxu0
    %v496 = vadd.f32 0.0, %v495
    %v497 = vpop.f32.mrb[0].mxu0
    %v498 = vpop.f32.mrb[0].mxu0
    %v499 = vpop.f32.mrb[0].mxu0
    %500 = vdwg.mxu0
    %501 = vmatprep.subr.bf16.mxu0 0
    %502 = vmatpush1.bf16.msra.mxu0 %v381
    %503 = vmatprep.subr.bf16.mxu0 0
    %504 = vmatpush1.bf16.msra.mxu0 %v382
    %505 = vmatprep.subr.bf16.mxu0 0
    %506 = vmatpush1.bf16.msra.mxu0 %v383
    %507 = vmatprep.subr.bf16.mxu0 0
    %508 = vmatpush1.bf16.msra.mxu0 %v384
    %509 = vmatprep.subr.bf16.mxu0 0
    %510 = vmatpush1.bf16.msra.mxu0 %v385
    %511 = vmatprep.subr.bf16.mxu0 0
    %512 = vmatpush1.bf16.msra.mxu0 %v386
    %513 = vmatprep.subr.bf16.mxu0 0
    %514 = vmatpush1.bf16.msra.mxu0 %v387
    %515 = vmatprep.subr.bf16.mxu0 0
    %516 = vmatpush1.bf16.msra.mxu0 %v388
    %517 = vmatprep.subr.bf16.mxu0 0
    %518 = vmatpush1.bf16.msra.mxu0 %v389
    %519 = vmatprep.subr.bf16.mxu0 0
    %520 = vmatpush1.bf16.msra.mxu0 %v390
    %521 = vmatprep.subr.bf16.mxu0 0
    %522 = vmatpush1.bf16.msra.mxu0 %v391
    %523 = vmatprep.subr.bf16.mxu0 0
    %524 = vmatpush1.bf16.msra.mxu0 %v392
    %525 = vmatprep.subr.bf16.mxu0 0
    %526 = vmatpush1.bf16.msra.mxu0 %v393
    %527 = vmatprep.subr.bf16.mxu0 0
    %528 = vmatpush1.bf16.msra.mxu0 %v394
    %529 = vmatprep.subr.bf16.mxu0 0
    %530 = vmatpush1.bf16.msra.mxu0 %v395
    %531 = vmatprep.subr.bf16.mxu0 0
    %532 = vmatpush1.bf16.msra.mxu0 %v396
    %533 = vmatprep.mubr.bf16.mxu0 %v158
    %534 = vmatmul.mubr.bf16.gmra.mrb[0].mxu0 %v156
    %v535 = vpop.f32.mrb[0].mxu0
    %v536 = vadd.f32 %v496, %v535
    %v537 = vpop.f32.mrb[0].mxu0
    %v538 = vpop.f32.mrb[0].mxu0
    %v539 = vpop.f32.mrb[0].mxu0
    %540 = vdwg.mxu0
    %541 = vmatprep.subr.bf16.mxu0 0
    %542 = vmatpush1.bf16.msra.mxu0 %v397
    %543 = vmatprep.subr.bf16.mxu0 0
    %544 = vmatpush1.bf16.msra.mxu0 %v398
    %545 = vmatprep.subr.bf16.mxu0 0
    %546 = vmatpush1.bf16.msra.mxu0 %v399
    %547 = vmatprep.subr.bf16.mxu0 0
    %548 = vmatpush1.bf16.msra.mxu0 %v400
    %549 = vmatprep.subr.bf16.mxu0 0
    %550 = vmatpush1.bf16.msra.mxu0 %v401
    %551 = vmatprep.subr.bf16.mxu0 0
    %552 = vmatpush1.bf16.msra.mxu0 %v402
    %553 = vmatprep.subr.bf16.mxu0 0
    %554 = vmatpush1.bf16.msra.mxu0 %v403
    %555 = vmatprep.subr.bf16.mxu0 0
    %556 = vmatpush1.bf16.msra.mxu0 %v404
    %557 = vmatprep.subr.bf16.mxu0 0
    %558 = vmatpush1.bf16.msra.mxu0 %v405
    %559 = vmatprep.subr.bf16.mxu0 0
    %560 = vmatpush1.bf16.msra.mxu0 %v406
    %561 = vmatprep.subr.bf16.mxu0 0
    %562 = vmatpush1.bf16.msra.mxu0 %v407
    %563 = vmatprep.subr.bf16.mxu0 0
    %564 = vmatpush1.bf16.msra.mxu0 %v408
    %565 = vmatprep.subr.bf16.mxu0 0
    %566 = vmatpush1.bf16.msra.mxu0 %v409
    %567 = vmatprep.subr.bf16.mxu0 0
    %568 = vmatpush1.bf16.msra.mxu0 %v410
    %569 = vmatprep.subr.bf16.mxu0 0
    %570 = vmatpush1.bf16.msra.mxu0 %v411
    %571 = vmatprep.subr.bf16.mxu0 0
    %572 = vmatpush1.bf16.msra.mxu0 %v412
    %573 = vmatprep.mubr.bf16.mxu0 %v166
    %574 = vmatmul.mubr.bf16.gmra.mrb[0].mxu0 %v165
    %v575 = vpop.f32.mrb[0].mxu0
    %v576 = vadd.f32 %v536, %v575
    %v577 = vpop.f32.mrb[0].mxu0
    %v578 = vpop.f32.mrb[0].mxu0
    %v579 = vpop.f32.mrb[0].mxu0
    %580 = vdwg.mxu0
    %vm581 = vcmask 1043456
    %v582 = vsel %vm581, %v576, 0.0
    %v583 = vrot.slane %v582, 4
    %v584 = vadd.f32 %v582, %v583
    %v585 = vrot.slane %v584, 2
    %v586 = vadd.f32 %v584, %v585
    %v587 = vrot.slane %v586, 1
    %v588 = vadd.f32 %v586, %v587
    %v589 = vrcp.pop 4.0
    %v590 = vmul.f32 %v588, %v589
    %v591 = vsub.f32 %v576, %v590
    %v592 = vmul.f32 %v591, %v591
    %v593 = vsel %vm581, %v592, 0.0
    %v594 = vrot.slane %v593, 4
    %v595 = vadd.f32 %v593, %v594
    %v596 = vrot.slane %v595, 2
    %v597 = vadd.f32 %v595, %v596
    %v598 = vrot.slane %v597, 1
    %v599 = vadd.f32 %v597, %v598
    %v600 = vmul.f32 %v599, %v589
    %v601 = vadd.f32 %v600, 1e-05
    %v602 = vrsqrt.pop %v601
    %v603 = vld [vmem:[%s2] sm:$0x1]
    %v604 = vld [vmem:[%s2 + $0x1] sm:$0x1]
    %v605 = vmul.f32 %v591, %v602
    %v606 = vlaneseq
    %v607 = vshrl.u32 %v606, 7
    %v608 = vsub.s32 0, %v607
    %v609 = vrot.slane %v603, %v608
    %v610 = vmul.f32 %v605, %v609
    %v611 = vlaneseq
    %v612 = vshrl.u32 %v611, 7
    %v613 = vsub.s32 0, %v612
    %v614 = vrot.slane %v604, %v613
    %v615 = vadd.f32 %v610, %v614
    %616 = vst [vmem:[#allocation7] sm:$0xf] %v615
    // Predicated region
    $region22: #{tpu_custom_call.1} parent=1 // pred_check
      _
    $region23: #{tpu_custom_call.1} parent=1 // pred_check_branch
      %618 = sbr.rel (0) target = $region25
    $region24: #{tpu_custom_call.1} parent=1 // pred_region
      %s620 = ssub.s32 64, 64
      %621 = vsyncadd [#allocation4], %s620
      %s623 = sshll.u32 [#allocation7], 4
      %s624 = int_to_ptr.vmem [resolvable:$true] %s623
      %626 = dma.vmem_to_hbm [thread:$0]  %s624, 64, %s3, [#allocation4]
    $region25: #{tpu_custom_call.1} parent=1 // pred_fallthru
      _
    // Predicated region
    $region26: #{tpu_custom_call.1} parent=1 // pred_check
      _
    $region27: #{tpu_custom_call.1} parent=1 // pred_check_branch
      %628 = sbr.rel (0) target = $region29
    $region28: #{tpu_custom_call.1} parent=1 // pred_region
      %629 = dma.done [#allocation4], 64
    $region29: #{tpu_custom_call.1} parent=1 // pred_fallthru
      _
    %630 = vsyncpa [#allocation3], 1
    %631 = vsyncpa [#allocation6], 1
    %632 = vsyncpa [#allocation4], 1

</llo_original>
